<compile_context>
chip_gen: v7x
topology: tpu7x:2x2x1
jax: 0.10.0
libtpu: 0.0.40
codegen_flags: <defaults>
</compile_context>

<pallas_src>
import jax
import jax.numpy as jnp
from jax.experimental import pallas as pl
from jax.experimental.pallas import tpu as pltpu

IN_FEATURES = 32
HIDDEN = 128
OUT_FEATURES = 64
DTYPE = jnp.bfloat16


def _round_up(n: int, m: int) -> int:
    return ((n + m - 1) // m) * m


def mlp_kernel(x_ref, w1_ref, b1_ref, w2_ref, b2_ref, o_ref):
    # x_ref: (TB, 32) bf16 batch tile; weights/biases are VMEM-resident across the grid.
    x = x_ref[...]                                                     # (TB, 32) bf16
    # fc1 + ReLU: accumulate in f32 on the MXU, f32 epilogue (v5e has no bf16 VPU),
    # then cast back to bf16 to match PyTorch bf16 Linear output semantics.
    h = jnp.dot(x, w1_ref[...], preferred_element_type=jnp.float32)    # (TB, 128) f32
    h = jnp.maximum(h + b1_ref[...], 0.0).astype(DTYPE)                # (TB, 128) bf16
    # fc2 + ReLU
    o = jnp.dot(h, w2_ref[...], preferred_element_type=jnp.float32)    # (TB, 64) f32
    o_ref[...] = jnp.maximum(o + b2_ref[...], 0.0).astype(o_ref.dtype) # (TB, 64) bf16


def mlp_forward(x, w1, b1, w2, b2, *, block_b: int = 1024):
    """relu(relu(x @ w1 + b1) @ w2 + b2) with batch-tiled Pallas pipelining."""
    B = x.shape[0]

    # Batch tile: multiple of 16 (bf16 sublane packing); cap at block_b.
    TB = min(block_b, _round_up(max(B, 1), 16))
    B_pad = _round_up(B, TB)
    if B_pad != B:
        x = jnp.pad(x, ((0, B_pad - B), (0, 0)))
    grid = (B_pad // TB,)

    # Biases pre-cast to f32 and kept 2-D (1, F) for TPU-friendly broadcasting.
    b1_2d = b1.astype(jnp.float32).reshape(1, HIDDEN)
    b2_2d = b2.astype(jnp.float32).reshape(1, OUT_FEATURES)

    # Explicit VMEM budget: double-buffered x/out tiles, weights, biases,
    # f32 hidden intermediates + generous headroom.  Well under v7x's 64 MiB.
    vmem_bytes = (
        2 * TB * IN_FEATURES * 2          # x tiles (bf16, 2 buffers)
        + 2 * TB * OUT_FEATURES * 2       # out tiles (bf16, 2 buffers)
        + 2 * (IN_FEATURES * HIDDEN + HIDDEN * OUT_FEATURES) * 2  # weights (bf16, 2 bufs)
        + 2 * (HIDDEN + OUT_FEATURES) * 4                         # biases (f32, 2 bufs)
        + 2 * TB * HIDDEN * 4             # f32 intermediates / epilogue headroom
        + (4 << 20)                       # slack for compiler temporaries
    )

    out = pl.pallas_call(
        mlp_kernel,
        out_shape=jax.ShapeDtypeStruct((B_pad, OUT_FEATURES), DTYPE),
        grid=grid,
        in_specs=[
            # Streamed per grid step (double-buffered by Pallas).
            pl.BlockSpec((TB, IN_FEATURES), lambda i: (i, 0)),
            # Constant index_map -> fetched once, stays resident in VMEM.
            pl.BlockSpec((IN_FEATURES, HIDDEN), lambda i: (0, 0)),
            pl.BlockSpec((1, HIDDEN), lambda i: (0, 0)),
            pl.BlockSpec((HIDDEN, OUT_FEATURES), lambda i: (0, 0)),
            pl.BlockSpec((1, OUT_FEATURES), lambda i: (0, 0)),
        ],
        out_specs=pl.BlockSpec((TB, OUT_FEATURES), lambda i: (i, 0)),
        compiler_params=pltpu.CompilerParams(
            dimension_semantics=("parallel",),   # megacore split on v7x; no-op on v5e/v6e
            vmem_limit_bytes=int(vmem_bytes),
        ),
    )(x, w1, b1_2d, w2, b2_2d)

    return out[:B] if B_pad != B else out


def init_params(key):
    # Deterministic init mimicking nn.Linear's uniform(-1/sqrt(fan_in), 1/sqrt(fan_in)).
    k1, k2, k3, k4 = jax.random.split(key, 4)
    bound1 = 1.0 / (IN_FEATURES ** 0.5)
    bound2 = 1.0 / (HIDDEN ** 0.5)
    # Stored as (in, out) — transpose of PyTorch's (out, in) weight layout.
    w1 = jax.random.uniform(k1, (IN_FEATURES, HIDDEN), jnp.float32, -bound1, bound1).astype(DTYPE)
    b1 = jax.random.uniform(k2, (HIDDEN,), jnp.float32, -bound1, bound1).astype(DTYPE)
    w2 = jax.random.uniform(k3, (HIDDEN, OUT_FEATURES), jnp.float32, -bound2, bound2).astype(DTYPE)
    b2 = jax.random.uniform(k4, (OUT_FEATURES,), jnp.float32, -bound2, bound2).astype(DTYPE)
    return w1, b1, w2, b2


def _reference(x, w1, b1, w2, b2):
    # Plain-JAX reference mirroring bf16 PyTorch Linear semantics.
    h = x.astype(jnp.float32) @ w1.astype(jnp.float32) + b1.astype(jnp.float32)
    h = jnp.maximum(h, 0.0).astype(DTYPE).astype(jnp.float32)
    o = h @ w2.astype(jnp.float32) + b2.astype(jnp.float32)
    return jnp.maximum(o, 0.0).astype(DTYPE)


if __name__ == "__main__":
    key = jax.random.PRNGKey(0)
    pkey, xkey = jax.random.split(key)
    w1, b1, w2, b2 = init_params(pkey)

    batch = 8  # small example; deliberately not a multiple of 16 tile -> exercises padding
    x = jax.random.normal(xkey, (batch, IN_FEATURES), jnp.float32).astype(DTYPE)

    out = mlp_forward(x, w1, b1, w2, b2)
    out = jax.block_until_ready(out)

    ref = _reference(x, w1, b1, w2, b2)
    assert out.shape == (batch, OUT_FEATURES) and out.dtype == DTYPE
    assert jnp.allclose(out.astype(jnp.float32), ref.astype(jnp.float32), atol=2e-2, rtol=2e-2)

    print("KERNEL_OK")
</pallas_src>

<mosaic_0001>
module attributes {stable_mosaic.version = 11 : i64} {
  func.func @mlp_kernel(%arg0: i32, %arg1: memref<16x32xbf16, #tpu.memory_space<vmem>>, %arg2: memref<32x128xbf16, #tpu.memory_space<vmem>>, %arg3: memref<1x128xf32, #tpu.memory_space<vmem>>, %arg4: memref<128x64xbf16, #tpu.memory_space<vmem>>, %arg5: memref<1x64xf32, #tpu.memory_space<vmem>>, %arg6: memref<16x64xbf16, #tpu.memory_space<vmem>>) attributes {dimension_semantics = [#tpu.dimension_semantics<parallel>], iteration_bounds = array<i64: 1>, scalar_prefetch = 0 : i64, scratch_operands = 0 : i64, tpu.core_type = #tpu.core_type<tc>, window_params = [{transform_indices = @transform_0, window_bounds = array<i64: 16, 32>}, {pipeline_mode = #tpu.pipeline_mode<synchronous>, transform_indices = @transform_1, window_bounds = array<i64: 32, 128>}, {pipeline_mode = #tpu.pipeline_mode<synchronous>, transform_indices = @transform_2, window_bounds = array<i64: 1, 128>}, {pipeline_mode = #tpu.pipeline_mode<synchronous>, transform_indices = @transform_3, window_bounds = array<i64: 128, 64>}, {pipeline_mode = #tpu.pipeline_mode<synchronous>, transform_indices = @transform_4, window_bounds = array<i64: 1, 64>}, {transform_indices = @transform_5, window_bounds = array<i64: 16, 64>}]} {
    %c0 = arith.constant 0 : index
    %c0_0 = arith.constant 0 : index
    %0 = vector.load %arg1[%c0, %c0_0] : memref<16x32xbf16, #tpu.memory_space<vmem>>, vector<16x32xbf16>
    %c0_1 = arith.constant 0 : index
    %c0_2 = arith.constant 0 : index
    %1 = vector.load %arg2[%c0_1, %c0_2] : memref<32x128xbf16, #tpu.memory_space<vmem>>, vector<32x128xbf16>
    %cst = arith.constant dense<0.000000e+00> : vector<16x128xf32>
    %2 = tpu.matmul %0, %1, %cst {dimension_numbers = #tpu.dot_dimension_numbers<[1], [0], [0], [1], [0, 0, 1, 1], [], []>} : vector<16x32xbf16>, vector<32x128xbf16>, vector<16x128xf32> -> vector<16x128xf32>
    %c0_3 = arith.constant 0 : index
    %c0_4 = arith.constant 0 : index
    %3 = vector.load %arg3[%c0_3, %c0_4] : memref<1x128xf32, #tpu.memory_space<vmem>>, vector<1x128xf32>
    %4 = vector.broadcast %3 : vector<1x128xf32> to vector<16x128xf32>
    %5 = arith.addf %2, %4 : vector<16x128xf32>
    %cst_5 = arith.constant 0.000000e+00 : f32
    %6 = vector.broadcast %cst_5 : f32 to vector<16x128xf32>
    %7 = arith.maximumf %5, %6 : vector<16x128xf32>
    %8 = arith.truncf %7 : vector<16x128xf32> to vector<16x128xbf16>
    %c0_6 = arith.constant 0 : index
    %c0_7 = arith.constant 0 : index
    %9 = vector.load %arg4[%c0_6, %c0_7] : memref<128x64xbf16, #tpu.memory_space<vmem>>, vector<128x64xbf16>
    %cst_8 = arith.constant dense<0.000000e+00> : vector<16x64xf32>
    %10 = tpu.matmul %8, %9, %cst_8 {dimension_numbers = #tpu.dot_dimension_numbers<[1], [0], [0], [1], [0, 0, 1, 1], [], []>} : vector<16x128xbf16>, vector<128x64xbf16>, vector<16x64xf32> -> vector<16x64xf32>
    %c0_9 = arith.constant 0 : index
    %c0_10 = arith.constant 0 : index
    %11 = vector.load %arg5[%c0_9, %c0_10] : memref<1x64xf32, #tpu.memory_space<vmem>>, vector<1x64xf32>
    %12 = vector.broadcast %11 : vector<1x64xf32> to vector<16x64xf32>
    %13 = arith.addf %10, %12 : vector<16x64xf32>
    %cst_11 = arith.constant 0.000000e+00 : f32
    %14 = vector.broadcast %cst_11 : f32 to vector<16x64xf32>
    %15 = arith.maximumf %13, %14 : vector<16x64xf32>
    %16 = arith.truncf %15 : vector<16x64xf32> to vector<16x64xbf16>
    %c0_12 = arith.constant 0 : index
    %c0_13 = arith.constant 0 : index
    %17 = vector.load %arg6[%c0_12, %c0_13] : memref<16x64xbf16, #tpu.memory_space<vmem>>, vector<16x64xbf16>
    tpu.vector_store %arg6[%c0_12, %c0_13], %16 {strides = array<i32>} : memref<16x64xbf16, #tpu.memory_space<vmem>>, vector<16x64xbf16>,
    return
  }
  func.func @transform_0(%arg0: i32) -> (i32, i32) {
    %c0_i32 = arith.constant 0 : i32
    %c0_i32_0 = arith.constant 0 : i32
    return %arg0, %c0_i32 : i32, i32
  }
  func.func @transform_1(%arg0: i32) -> (i32, i32) {
    %c0_i32 = arith.constant 0 : i32
    %c0_i32_0 = arith.constant 0 : i32
    %c0_i32_1 = arith.constant 0 : i32
    return %c0_i32, %c0_i32_0 : i32, i32
  }
  func.func @transform_2(%arg0: i32) -> (i32, i32) {
    %c0_i32 = arith.constant 0 : i32
    %c0_i32_0 = arith.constant 0 : i32
    %c0_i32_1 = arith.constant 0 : i32
    return %c0_i32, %c0_i32_0 : i32, i32
  }
  func.func @transform_3(%arg0: i32) -> (i32, i32) {
    %c0_i32 = arith.constant 0 : i32
    %c0_i32_0 = arith.constant 0 : i32
    %c0_i32_1 = arith.constant 0 : i32
    return %c0_i32, %c0_i32_0 : i32, i32
  }
  func.func @transform_4(%arg0: i32) -> (i32, i32) {
    %c0_i32 = arith.constant 0 : i32
    %c0_i32_0 = arith.constant 0 : i32
    %c0_i32_1 = arith.constant 0 : i32
    return %c0_i32, %c0_i32_0 : i32, i32
  }
  func.func @transform_5(%arg0: i32) -> (i32, i32) {
    %c0_i32 = arith.constant 0 : i32
    %c0_i32_0 = arith.constant 0 : i32
    return %arg0, %c0_i32 : i32, i32
  }
}

</mosaic_0001>

<llo_original>
// kernel: tpu_custom_call.1
$region0: #{tpu_custom_call.1}
  #allocation0 [shape = 'u32[]', space=smem, size = 0x4, offset = 0x4, fixed_abs, tag = 'smem constant byte address 0x4 - core index']
  #allocation1 [shape = 'u32[144,128]{1,0:T(1,128)}', space=vmem, size = 0x12000, scoped, tag = 'internal scratch']
  %s0 = inlined_call_operand.vmem [shape: bf16[16,32], index: 0, kind: input, shape index: {}]
  %s1 = inlined_call_operand.vmem [shape: bf16[32,128], index: 1, kind: input, shape index: {}]
  %s2 = inlined_call_operand.vmem [shape: f32[1,128], index: 2, kind: input, shape index: {}]
  %s3 = inlined_call_operand.vmem [shape: bf16[128,64], index: 3, kind: input, shape index: {}]
  %s4 = inlined_call_operand.vmem [shape: f32[1,64], index: 4, kind: input, shape index: {}]
  %s5 = inlined_call_operand.hbm [shape: bf16[16,64], index: 5, kind: output, shape index: {}]
  %s6 = sld [smem:[#allocation0]]
  $region30: #{tpu_custom_call.1} parent=0
    _
  %s8 = ssub.s32 1, %s6
  %s9 = scalar_select 0, %s8, %s6
  $region1: #{tpu_custom_call.1} parent=0
    #allocation2 [shape = 'u8[4096]{0}', space=vmem, size = 0x1000, scoped, tag = 'output window, operand 0, single buffered']
    #allocation3 [shape = 's32[1]{0}', space=sflag, size = 0x4, scoped, tag = 'scoped memory for tpu_custom_call.1']
    %10 = vsyncpa [#allocation3], 0
    // Predicated region
    $region2: #{tpu_custom_call.1} parent=1 // pred_check
      _
    $region3: #{tpu_custom_call.1} parent=1 // pred_check_branch
      %12 = sbr.rel (0) target = $region5
    $region4: #{tpu_custom_call.1} parent=1 // pred_region
      _
    $region5: #{tpu_custom_call.1} parent=1 // pred_fallthru
      _
    // Predicated region
    $region6: #{tpu_custom_call.1} parent=1 // pred_check
      _
    $region7: #{tpu_custom_call.1} parent=1 // pred_check_branch
      %14 = sbr.rel (0) target = $region9
    $region8: #{tpu_custom_call.1} parent=1 // pred_region
      _
    $region9: #{tpu_custom_call.1} parent=1 // pred_fallthru
      _
    // Predicated region
    $region10: #{tpu_custom_call.1} parent=1 // pred_check
      _
    $region11: #{tpu_custom_call.1} parent=1 // pred_check_branch
      %16 = sbr.rel (0) target = $region13
    $region12: #{tpu_custom_call.1} parent=1 // pred_region
      _
    $region13: #{tpu_custom_call.1} parent=1 // pred_fallthru
      _
    // Predicated region
    $region14: #{tpu_custom_call.1} parent=1 // pred_check
      _
    $region15: #{tpu_custom_call.1} parent=1 // pred_check_branch
      %18 = sbr.rel (0) target = $region17
    $region16: #{tpu_custom_call.1} parent=1 // pred_region
      _
    $region17: #{tpu_custom_call.1} parent=1 // pred_fallthru
      _
    // Predicated region
    $region18: #{tpu_custom_call.1} parent=1 // pred_check
      _
    $region19: #{tpu_custom_call.1} parent=1 // pred_check_branch
      %20 = sbr.rel (0) target = $region21
    $region20: #{tpu_custom_call.1} parent=1 // pred_region
      _
    $region21: #{tpu_custom_call.1} parent=1 // pred_fallthru
      _
    %v22 = vld [vmem:[%s0] sm:$0xf]
    %v23 = vld [vmem:[%s0 + $0x4] sm:$0xf]
    %v24 = vld [vmem:[%s1] sm:$0xf]
    %v25 = vld [vmem:[%s1 + $0x4] sm:$0xf]
    %v26 = vld [vmem:[%s1 + $0x8] sm:$0xf]
    %v27 = vld [vmem:[%s1 + $0xc] sm:$0xf]
    %v28 = vld [vmem:[%s2] sm:$0x1]
    %v30 = vlaneseq
    %v31 = vshrl.u32 %v30, 7
    %v32 = vsub.s32 0, %v31
    %v33 = vrot.slane %v28, %v32
    %v37 = vunpack.c.l.b16 %v22
    %v38 = vunpack.c.l.b16 %v23
    %v39 = vpack.c.b16 %v38, %v37
    %v44 = vunpack.c.l.b16 %v24
    %v45 = vunpack.c.l.b16 %v25
    %v46 = vunpack.c.l.b16 %v26
    %v47 = vunpack.c.l.b16 %v27
    %v48 = vpack.c.b16 %v45, %v44
    %v49 = vpack.c.b16 %v47, %v46
    %vm52 = vcmask 261120
    %v54 = vsel %vm52, %v39, 0
    %56 = vmatprep.subr.bf16.mxu0 0
    %57 = vmatpush1.bf16.msra.mxu0 %v48
    %58 = vmatprep.subr.bf16.mxu0 0
    %59 = vmatpush1.bf16.msra.mxu0 %v49
    %60 = vmatprep.subr.bf16.mxu0 0
    %61 = vmatpush1.bf16.msra.mxu0 0
    %62 = vmatprep.subr.bf16.mxu0 0
    %63 = vmatpush1.bf16.msra.mxu0 0
    %64 = vmatprep.subr.bf16.mxu0 0
    %65 = vmatpush1.bf16.msra.mxu0 0
    %66 = vmatprep.subr.bf16.mxu0 0
    %67 = vmatpush1.bf16.msra.mxu0 0
    %68 = vmatprep.subr.bf16.mxu0 0
    %69 = vmatpush1.bf16.msra.mxu0 0
    %70 = vmatprep.subr.bf16.mxu0 0
    %71 = vmatpush1.bf16.msra.mxu0 0
    %72 = vmatprep.subr.bf16.mxu0 0
    %73 = vmatpush1.bf16.msra.mxu0 0
    %74 = vmatprep.subr.bf16.mxu0 0
    %75 = vmatpush1.bf16.msra.mxu0 0
    %76 = vmatprep.subr.bf16.mxu0 0
    %77 = vmatpush1.bf16.msra.mxu0 0
    %78 = vmatprep.subr.bf16.mxu0 0
    %79 = vmatpush1.bf16.msra.mxu0 0
    %80 = vmatprep.subr.bf16.mxu0 0
    %81 = vmatpush1.bf16.msra.mxu0 0
    %82 = vmatprep.subr.bf16.mxu0 0
    %83 = vmatpush1.bf16.msra.mxu0 0
    %84 = vmatprep.subr.bf16.mxu0 0
    %85 = vmatpush1.bf16.msra.mxu0 0
    %86 = vmatprep.subr.bf16.mxu0 0
    %87 = vmatpush1.bf16.msra.mxu0 0
    %88 = vmatprep.mubr.bf16.mxu0 0
    %89 = vmatmul.mubr.bf16.gmra.mrb[0].mxu0 %v54
    %v90 = vpop.f32.mrb[0].mxu0
    %v91 = vadd.f32 %v33, %v90
    %v92 = vpop.f32.mrb[0].mxu0
    %v93 = vpop.f32.mrb[0].mxu0
    %v94 = vadd.f32 %v33, %v93
    %v95 = vpop.f32.mrb[0].mxu0
    %96 = vdwg.mxu0
    %v97 = vmax.f32 %v91, 0.0
    %v98 = vmax.f32 %v94, 0.0
    %v99 = vpack.c.bf16 %v98, %v97
    %v100 = vld [vmem:[%s3] sm:$0xf]
    %v101 = vld [vmem:[%s3 + $0x4] sm:$0xf]
    %v102 = vld [vmem:[%s3 + $0x8] sm:$0xf]
    %v103 = vld [vmem:[%s3 + $0xc] sm:$0xf]
    %v104 = vld [vmem:[%s3 + $0x10] sm:$0xf]
    %v105 = vld [vmem:[%s3 + $0x14] sm:$0xf]
    %v106 = vld [vmem:[%s3 + $0x18] sm:$0xf]
    %v107 = vld [vmem:[%s3 + $0x1c] sm:$0xf]
    %v108 = vld [vmem:[%s3 + $0x20] sm:$0xf]
    %v109 = vld [vmem:[%s3 + $0x24] sm:$0xf]
    %v110 = vld [vmem:[%s3 + $0x28] sm:$0xf]
    %v111 = vld [vmem:[%s3 + $0x2c] sm:$0xf]
    %v112 = vld [vmem:[%s3 + $0x30] sm:$0xf]
    %v113 = vld [vmem:[%s3 + $0x34] sm:$0xf]
    %v114 = vld [vmem:[%s3 + $0x38] sm:$0xf]
    %v115 = vld [vmem:[%s3 + $0x3c] sm:$0xf]
    %v116 = vld [vmem:[%s4] sm:$0x1]
    %v118 = vlaneseq
    %v119 = vshrl.u32 %v118, 7
    %v120 = vsub.s32 0, %v119
    %v121 = vrot.slane %v116, %v120
    %v139 = vunpack.c.l.b16 %v100
    %v140 = vunpack.c.l.b16 %v101
    %v141 = vunpack.c.l.b16 %v102
    %v142 = vunpack.c.l.b16 %v103
    %v143 = vunpack.c.l.b16 %v104
    %v144 = vunpack.c.l.b16 %v105
    %v145 = vunpack.c.l.b16 %v106
    %v146 = vunpack.c.l.b16 %v107
    %v147 = vunpack.c.l.b16 %v108
    %v148 = vunpack.c.l.b16 %v109
    %v149 = vunpack.c.l.b16 %v110
    %v150 = vunpack.c.l.b16 %v111
    %v151 = vunpack.c.l.b16 %v112
    %v152 = vunpack.c.l.b16 %v113
    %v153 = vunpack.c.l.b16 %v114
    %v154 = vunpack.c.l.b16 %v115
    %v155 = vpack.c.b16 %v140, %v139
    %v156 = vpack.c.b16 %v142, %v141
    %v157 = vpack.c.b16 %v144, %v143
    %v158 = vpack.c.b16 %v146, %v145
    %v159 = vpack.c.b16 %v148, %v147
    %v160 = vpack.c.b16 %v150, %v149
    %v161 = vpack.c.b16 %v152, %v151
    %v162 = vpack.c.b16 %v154, %v153
    %171 = vmatprep.subr.bf16.mxu0 0
    %172 = vmatpush1.bf16.msra.mxu0 %v155
    %173 = vmatprep.subr.bf16.mxu0 0
    %174 = vmatpush1.bf16.msra.mxu0 %v156
    %175 = vmatprep.subr.bf16.mxu0 0
    %176 = vmatpush1.bf16.msra.mxu0 %v157
    %177 = vmatprep.subr.bf16.mxu0 0
    %178 = vmatpush1.bf16.msra.mxu0 %v158
    %179 = vmatprep.subr.bf16.mxu0 0
    %180 = vmatpush1.bf16.msra.mxu0 %v159
    %181 = vmatprep.subr.bf16.mxu0 0
    %182 = vmatpush1.bf16.msra.mxu0 %v160
    %183 = vmatprep.subr.bf16.mxu0 0
    %184 = vmatpush1.bf16.msra.mxu0 %v161
    %185 = vmatprep.subr.bf16.mxu0 0
    %186 = vmatpush1.bf16.msra.mxu0 %v162
    %187 = vmatprep.subr.bf16.mxu0 0
    %188 = vmatpush1.bf16.msra.mxu0 0
    %189 = vmatprep.subr.bf16.mxu0 0
    %190 = vmatpush1.bf16.msra.mxu0 0
    %191 = vmatprep.subr.bf16.mxu0 0
    %192 = vmatpush1.bf16.msra.mxu0 0
    %193 = vmatprep.subr.bf16.mxu0 0
    %194 = vmatpush1.bf16.msra.mxu0 0
    %195 = vmatprep.subr.bf16.mxu0 0
    %196 = vmatpush1.bf16.msra.mxu0 0
    %197 = vmatprep.subr.bf16.mxu0 0
    %198 = vmatpush1.bf16.msra.mxu0 0
    %199 = vmatprep.subr.bf16.mxu0 0
    %200 = vmatpush1.bf16.msra.mxu0 0
    %201 = vmatprep.subr.bf16.mxu0 0
    %202 = vmatpush1.bf16.msra.mxu0 0
    %203 = vmatprep.mubr.bf16.mxu0 0
    %204 = vmatmul.mubr.bf16.gmra.mrb[0].mxu0 %v99
    %v205 = vpop.f32.mrb[0].mxu0
    %v206 = vadd.f32 %v121, %v205
    %v207 = vpop.f32.mrb[0].mxu0
    %v208 = vpop.f32.mrb[0].mxu0
    %v209 = vadd.f32 %v121, %v208
    %v210 = vpop.f32.mrb[0].mxu0
    %211 = vdwg.mxu0
    %v212 = vmax.f32 %v206, 0.0
    %v213 = vmax.f32 %v209, 0.0
    %v214 = vpack.c.bf16 %v213, %v212
    %v216 = vunpack.c.l.b16 %v214
    %v217 = vunpack.c.h.b16 %v214
    %v218 = vpack.c.b16 %v216, %v216
    %v219 = vpack.c.b16 %v217, %v217
    %vm222 = vcmask 519168
    %223 = vst.msk [vmem:[#allocation2] sm:$0xf] %vm222, %v218
    %224 = vst.msk [vmem:[#allocation2 + $0x4] sm:$0xf] %vm222, %v219
    // Predicated region
    $region22: #{tpu_custom_call.1} parent=1 // pred_check
      _
    $region23: #{tpu_custom_call.1} parent=1 // pred_check_branch
      %226 = sbr.rel (0) target = $region25
    $region24: #{tpu_custom_call.1} parent=1 // pred_region
      %s228 = ssub.s32 128, 128
      %229 = vsyncadd [#allocation3], %s228
      %s230 = sshll.u32 [#allocation2], 4
      %s231 = int_to_ptr.vmem [resolvable:$true] %s230
      %236 = dma.vmem_to_hbm [thread:$0]  %s231, 128, %s5, [#allocation3], 64, 64, 4
    $region25: #{tpu_custom_call.1} parent=1 // pred_fallthru
      _
    // Predicated region
    $region26: #{tpu_custom_call.1} parent=1 // pred_check
      _
    $region27: #{tpu_custom_call.1} parent=1 // pred_check_branch
      %238 = sbr.rel (0) target = $region29
    $region28: #{tpu_custom_call.1} parent=1 // pred_region
      %239 = dma.done [#allocation3], 128
    $region29: #{tpu_custom_call.1} parent=1 // pred_fallthru
      _
    %240 = vsyncpa [#allocation3], 1

</llo_original>
